<compile_context>
chip_gen: v7x
topology: tpu7x:2x2x1
jax: 0.10.0
libtpu: 0.0.40
codegen_flags: <defaults>
</compile_context>

<pallas_src>
import functools
import math

import jax
import jax.numpy as jnp
from jax.experimental import pallas as pl
from jax.experimental.pallas import tpu as pltpu


_VMEM_LIMIT = 48 * 1024 * 1024  # < v7x 64 MiB physical, > v5e 16 MiB default scoped


def _pick_tile(dim, target, granule):
    """Largest multiple-of-`granule` divisor of `dim` that is <= `target`.

    If dim <= target the full extent is used (exempt from the (8,128) rule)."""
    if dim <= target:
        return dim
    cand = (target // granule) * granule
    while cand >= granule:
        if dim % cand == 0:
            return cand
        cand -= granule
    # TODO(synk): dims with no aligned divisor <= target need a cdiv grid with
    # masked remainder blocks; fall back to the full extent only as last resort.
    return dim


# ---------------------------------------------------------------------------
# 1) Tiled matmul (1x1-conv projections), bf16 operands, f32 accumulation
# ---------------------------------------------------------------------------
def _matmul_kernel(a_ref, b_ref, o_ref, acc_ref):
    @pl.when(pl.program_id(2) == 0)
    def _():
        acc_ref[...] = jnp.zeros(acc_ref.shape, acc_ref.dtype)

    acc_ref[...] += jnp.dot(a_ref[...], b_ref[...],
                            preferred_element_type=jnp.float32)

    @pl.when(pl.program_id(2) == pl.num_programs(2) - 1)
    def _():
        o_ref[...] = acc_ref[...].astype(o_ref.dtype)


def matmul(a, b, *, tm=256, tn=256, tk=512, out_dtype=None):
    M, K = a.shape
    K2, N = b.shape
    assert K == K2
    tm = _pick_tile(M, tm, 8)      # sublane dim of A / out blocks
    tn = _pick_tile(N, tn, 128)    # lane dim of B / out blocks
    tk = _pick_tile(K, tk, 128)    # lane dim of A block
    out_dtype = out_dtype or a.dtype
    return pl.pallas_call(
        _matmul_kernel,
        out_shape=jax.ShapeDtypeStruct((M, N), out_dtype),
        grid_spec=pltpu.PrefetchScalarGridSpec(
            num_scalar_prefetch=0,
            grid=(M // tm, N // tn, K // tk),
            in_specs=[pl.BlockSpec((tm, tk), lambda i, j, k: (i, k)),
                      pl.BlockSpec((tk, tn), lambda i, j, k: (k, j))],
            out_specs=pl.BlockSpec((tm, tn), lambda i, j, k: (i, j)),
            scratch_shapes=[pltpu.VMEM((tm, tn), jnp.float32)]),
        compiler_params=pltpu.CompilerParams(
            dimension_semantics=("parallel", "parallel", "arbitrary"),
            vmem_limit_bytes=_VMEM_LIMIT),
    )(a, b)


# ---------------------------------------------------------------------------
# 2) Multi-head attention (flash-style online softmax over KV tiles)
# ---------------------------------------------------------------------------
def _mha_kernel(q_ref, k_ref, v_ref, o_ref, m_sc, l_sc, acc_sc, *, scale):
    ki = pl.program_id(1)

    @pl.when(ki == 0)
    def _():
        m_sc[...] = jnp.full(m_sc.shape, -jnp.inf, dtype=m_sc.dtype)
        l_sc[...] = jnp.zeros(l_sc.shape, l_sc.dtype)
        acc_sc[...] = jnp.zeros(acc_sc.shape, acc_sc.dtype)

    # bf16 operands on the MXU, f32 accumulation; scale applied to f32 scores.
    s = jnp.einsum('bqd,bkd->bqk', q_ref[...], k_ref[...],
                   preferred_element_type=jnp.float32) * scale

    m_prev = m_sc[...]
    m_new = jnp.maximum(m_prev, s.max(axis=-1, keepdims=True))
    alpha = jnp.exp(m_prev - m_new)
    p = jnp.exp(s - m_new)
    l_sc[...] = alpha * l_sc[...] + p.sum(axis=-1, keepdims=True)
    acc_sc[...] = alpha * acc_sc[...] + jnp.einsum(
        'bqk,bkd->bqd', p.astype(v_ref.dtype), v_ref[...],
        preferred_element_type=jnp.float32)
    m_sc[...] = m_new

    @pl.when(ki == pl.num_programs(1) - 1)
    def _():
        # attention-weight dropout p = 0.0 -> identity.
        # TODO(synk): non-zero dropout needs pltpu.prng_seed/prng_random_bits masking.
        o_ref[...] = (acc_sc[...] *
                      pl.reciprocal(l_sc[...], approx=True)).astype(o_ref.dtype)


def mha_attention(q, k, v, *, tq=128, tkv=512):
    BH, N, dh = q.shape
    assert k.shape == (BH, N, dh) and v.shape == (BH, N, dh)
    tq = _pick_tile(N, tq, 8)
    tkv = _pick_tile(N, tkv, 8)
    nqt = N // tq
    kernel = functools.partial(_mha_kernel, scale=1.0 / math.sqrt(dh))
    # (batch*heads, q-tiles) folded into one leading "parallel" axis so work
    # shards across both v7x TensorCores even for small batch*heads.
    return pl.pallas_call(
        kernel,
        out_shape=jax.ShapeDtypeStruct((BH, N, dh), q.dtype),
        grid_spec=pltpu.PrefetchScalarGridSpec(
            num_scalar_prefetch=0,
            grid=(BH * nqt, N // tkv),
            in_specs=[
                pl.BlockSpec((1, tq, dh), lambda i, ki: (i // nqt, i % nqt, 0)),
                pl.BlockSpec((1, tkv, dh), lambda i, ki: (i // nqt, ki, 0)),
                pl.BlockSpec((1, tkv, dh), lambda i, ki: (i // nqt, ki, 0)),
            ],
            out_specs=pl.BlockSpec((1, tq, dh),
                                   lambda i, ki: (i // nqt, i % nqt, 0)),
            scratch_shapes=[pltpu.VMEM((1, tq, 1), jnp.float32),
                            pltpu.VMEM((1, tq, 1), jnp.float32),
                            pltpu.VMEM((1, tq, dh), jnp.float32)]),
        compiler_params=pltpu.CompilerParams(
            dimension_semantics=("parallel", "arbitrary"),
            vmem_limit_bytes=_VMEM_LIMIT),
    )(q, k, v)


# ---------------------------------------------------------------------------
# 3) Fused residual add + GroupNorm (one (group, spatial) slab per grid step;
#    spatial axis last -> lane-dense loads/stores)
# ---------------------------------------------------------------------------
def _res_groupnorm_kernel(att_ref, res_ref, o_ref, *, eps):
    y = att_ref[...].astype(jnp.float32) + res_ref[...].astype(jnp.float32)
    mean = jnp.mean(y)
    var = jnp.mean(jnp.square(y - mean))
    o_ref[...] = ((y - mean) * jax.lax.rsqrt(var + eps)).astype(o_ref.dtype)


def residual_groupnorm(att_gc, res_gc, *, eps=1e-5):
    # att_gc (bf16) / res_gc (f32): (B, G, C/G, H*W)
    B, G, cg, N = att_gc.shape
    # TODO(synk): very large cg*N slabs should tile the spatial axis with a
    # two-pass (partial stats, then normalize) to stay inside v7x/v5e VMEM.
    return pl.pallas_call(
        functools.partial(_res_groupnorm_kernel, eps=eps),
        out_shape=jax.ShapeDtypeStruct((B, G, cg, N), res_gc.dtype),
        grid_spec=pltpu.PrefetchScalarGridSpec(
            num_scalar_prefetch=0,
            grid=(B * G,),
            in_specs=[pl.BlockSpec((1, 1, cg, N), lambda i: (i // G, i % G, 0, 0)),
                      pl.BlockSpec((1, 1, cg, N), lambda i: (i // G, i % G, 0, 0))],
            out_specs=pl.BlockSpec((1, 1, cg, N), lambda i: (i // G, i % G, 0, 0))),
        compiler_params=pltpu.CompilerParams(
            dimension_semantics=("parallel",),
            vmem_limit_bytes=_VMEM_LIMIT),
    )(att_gc, res_gc)


# ---------------------------------------------------------------------------
# Full SelfAttentionBlock forward
# ---------------------------------------------------------------------------
def self_attention_block_forward(x, params, *, num_heads, num_groups, eps=1e-5,
                                 compute_dtype=jnp.bfloat16):
    """x: (B, C, H, W) f32. params: w_qkv (C, 3*Dh), w_o (Dh, C). Returns (B,C,H,W) f32."""
    B, C, H, W = x.shape
    N = H * W
    w_qkv, w_o = params["w_qkv"], params["w_o"]
    Dh = w_qkv.shape[1] // 3
    dh = Dh // num_heads
    assert Dh == num_heads * dh
    assert w_o.shape == (Dh, C), "dim_in == dim_out assumed (identity residual)"
    # TODO(synk): dim_in != dim_out needs the 1x1 residual conv (one more matmul + bias).
    # TODO(synk): GroupNormalX assumed to be nn.GroupNorm(num_groups) with unit affine.

    # 'b c h w -> b (h w) c' for the 1x1-conv projections.
    x_nc = x.reshape(B, C, N).transpose(0, 2, 1)              # (B, N, C) f32
    x_2d = x_nc.reshape(B * N, C).astype(compute_dtype)       # bf16 MXU operands

    # Fused Q/K/V projection (three bias-free 1x1 convs as one matmul).
    qkv = matmul(x_2d, w_qkv.astype(compute_dtype))           # (B*N, 3*Dh) bf16

    # Head split: (B*N, 3*Dh) -> (3, B*heads, N, dh) (single bf16 XLA transpose).
    qkv_h = (qkv.reshape(B, N, 3, num_heads, dh)
                .transpose(2, 0, 3, 1, 4)
                .reshape(3, B * num_heads, N, dh))
    o = mha_attention(qkv_h[0], qkv_h[1], qkv_h[2])           # (B*nh, N, dh) bf16

    # Head merge: (B*nh, N, dh) -> (B*N, Dh).
    o_2d = (o.reshape(B, num_heads, N, dh)
              .transpose(0, 2, 1, 3)
              .reshape(B * N, Dh))

    # Output projection (1x1 conv, bias=False).
    att = matmul(o_2d, w_o.astype(compute_dtype))             # (B*N, C) bf16

    # Grouped, lane-dense (B, G, C/G, H*W) layout for fused residual + GroupNorm.
    cg = C // num_groups
    att_gc = att.reshape(B, N, C).transpose(0, 2, 1).reshape(B, num_groups, cg, N)
    res_gc = x.reshape(B, num_groups, cg, N)                  # identity residual, f32

    # block-level dropout p = 0.0 -> identity; residual add + GroupNorm fused.
    y = residual_groupnorm(att_gc, res_gc, eps=eps)           # (B, G, cg, N) f32
    return y.reshape(B, C, H, W)


# ---------------------------------------------------------------------------
# Pure-JAX f32 reference mirroring the PyTorch module
# ---------------------------------------------------------------------------
def _reference(x, w_qkv, w_o, *, num_heads, num_groups, eps=1e-5):
    B, C, H, W = x.shape
    N = H * W
    Dh = w_qkv.shape[1] // 3
    dh = Dh // num_heads
    x_nc = x.reshape(B, C, N).transpose(0, 2, 1)
    qkv = x_nc @ w_qkv
    q, k, v = qkv[..., :Dh], qkv[..., Dh:2 * Dh], qkv[..., 2 * Dh:]

    def split_heads(t):
        return (t.reshape(B, N, num_heads, dh)
                 .transpose(0, 2, 1, 3)
                 .reshape(B * num_heads, N, dh))

    qh, kh, vh = map(split_heads, (q, k, v))
    s = jnp.einsum('bqd,bkd->bqk', qh, kh) / math.sqrt(dh)
    p = jax.nn.softmax(s, axis=-1)
    o = jnp.einsum('bqk,bkd->bqd', p, vh)
    o = o.reshape(B, num_heads, N, dh).transpose(0, 2, 1, 3).reshape(B, N, Dh)
    att = o @ w_o
    y = att + x_nc
    y = y.transpose(0, 2, 1).reshape(B, C, H, W)
    yg = y.reshape(B, num_groups, C // num_groups, H, W)
    mean = yg.mean(axis=(2, 3, 4), keepdims=True)
    var = yg.var(axis=(2, 3, 4), keepdims=True)
    return ((yg - mean) / jnp.sqrt(var + eps)).reshape(B, C, H, W)


if __name__ == "__main__":
    key = jax.random.PRNGKey(0)
    B, C, Hs, Ws = 2, 32, 16, 16
    num_heads, dim_heads, num_groups = 4, 8, 8
    Dh = num_heads * dim_heads

    k1, k2, k3 = jax.random.split(key, 3)
    x = jax.random.normal(k1, (B, C, Hs, Ws), dtype=jnp.float32)
    w_qkv = jax.random.normal(k2, (C, 3 * Dh), dtype=jnp.float32) / math.sqrt(C)
    w_o = jax.random.normal(k3, (Dh, C), dtype=jnp.float32) / math.sqrt(Dh)
    params = {"w_qkv": w_qkv, "w_o": w_o}

    out = self_attention_block_forward(
        x, params, num_heads=num_heads, num_groups=num_groups)
    out = jax.block_until_ready(out)

    ref = _reference(x, w_qkv, w_o, num_heads=num_heads, num_groups=num_groups)
    assert out.shape == (B, C, Hs, Ws)
    assert bool(jnp.all(jnp.isfinite(out)))
    err = float(jnp.max(jnp.abs(out.astype(jnp.float32) - ref)))
    assert err < 5e-2, f"mismatch, max abs err={err}"

    print("KERNEL_OK")
</pallas_src>

<mosaic_0001>
module attributes {stable_mosaic.version = 11 : i64} {
  func.func @_matmul_kernel(%arg0: i32, %arg1: i32, %arg2: i32, %arg3: memref<256x32xbf16, #tpu.memory_space<vmem>>, %arg4: memref<32x96xbf16, #tpu.memory_space<vmem>>, %arg5: memref<256x96xbf16, #tpu.memory_space<vmem>>, %arg6: memref<256x96xf32, #tpu.memory_space<vmem>>) attributes {dimension_semantics = [#tpu.dimension_semantics<parallel>, #tpu.dimension_semantics<parallel>, #tpu.dimension_semantics<arbitrary>], iteration_bounds = array<i64: 2, 1, 1>, scalar_prefetch = 0 : i64, scratch_operands = 1 : i64, tpu.core_type = #tpu.core_type<tc>, window_params = [{transform_indices = @transform_0, window_bounds = array<i64: 256, 32>}, {transform_indices = @transform_1, window_bounds = array<i64: 32, 96>}, {transform_indices = @transform_2, window_bounds = array<i64: 256, 96>}]} {
    %c0_i32 = arith.constant 0 : i32
    %0 = arith.cmpi eq, %arg2, %c0_i32 : i32
    %1 = arith.extui %0 : i1 to i32
    %c0_i32_0 = arith.constant 0 : i32
    %2 = arith.cmpi ne, %1, %c0_i32_0 : i32
    scf.if %2 {
      %cst_10 = arith.constant 0.000000e+00 : f32
      %12 = vector.broadcast %cst_10 : f32 to vector<256x96xf32>
      %c0_11 = arith.constant 0 : index
      %c0_12 = arith.constant 0 : index
      %13 = vector.load %arg6[%c0_11, %c0_12] : memref<256x96xf32, #tpu.memory_space<vmem>>, vector<256x96xf32>
      tpu.vector_store %arg6[%c0_11, %c0_12], %12 {strides = array<i32>} : memref<256x96xf32, #tpu.memory_space<vmem>>, vector<256x96xf32>,
    } else {
    }
    %c0 = arith.constant 0 : index
    %c0_1 = arith.constant 0 : index
    %3 = vector.load %arg6[%c0, %c0_1] : memref<256x96xf32, #tpu.memory_space<vmem>>, vector<256x96xf32>
    %c0_2 = arith.constant 0 : index
    %c0_3 = arith.constant 0 : index
    %4 = vector.load %arg3[%c0_2, %c0_3] : memref<256x32xbf16, #tpu.memory_space<vmem>>, vector<256x32xbf16>
    %c0_4 = arith.constant 0 : index
    %c0_5 = arith.constant 0 : index
    %5 = vector.load %arg4[%c0_4, %c0_5] : memref<32x96xbf16, #tpu.memory_space<vmem>>, vector<32x96xbf16>
    %cst = arith.constant dense<0.000000e+00> : vector<256x96xf32>
    %6 = tpu.matmul %4, %5, %cst {dimension_numbers = #tpu.dot_dimension_numbers<[1], [0], [0], [1], [0, 0, 1, 1], [], []>} : vector<256x32xbf16>, vector<32x96xbf16>, vector<256x96xf32> -> vector<256x96xf32>
    %7 = arith.addf %3, %6 : vector<256x96xf32>
    %c0_6 = arith.constant 0 : index
    %c0_7 = arith.constant 0 : index
    %8 = vector.load %arg6[%c0_6, %c0_7] : memref<256x96xf32, #tpu.memory_space<vmem>>, vector<256x96xf32>
    tpu.vector_store %arg6[%c0_6, %c0_7], %7 {strides = array<i32>} : memref<256x96xf32, #tpu.memory_space<vmem>>, vector<256x96xf32>,
    %c0_i32_8 = arith.constant 0 : i32
    %9 = arith.cmpi eq, %arg2, %c0_i32_8 : i32
    %10 = arith.extui %9 : i1 to i32
    %c0_i32_9 = arith.constant 0 : i32
    %11 = arith.cmpi ne, %10, %c0_i32_9 : i32
    scf.if %11 {
      %c0_10 = arith.constant 0 : index
      %c0_11 = arith.constant 0 : index
      %12 = vector.load %arg6[%c0_10, %c0_11] : memref<256x96xf32, #tpu.memory_space<vmem>>, vector<256x96xf32>
      %13 = arith.truncf %12 : vector<256x96xf32> to vector<256x96xbf16>
      %c0_12 = arith.constant 0 : index
      %c0_13 = arith.constant 0 : index
      %14 = vector.load %arg5[%c0_12, %c0_13] : memref<256x96xbf16, #tpu.memory_space<vmem>>, vector<256x96xbf16>
      tpu.vector_store %arg5[%c0_12, %c0_13], %13 {strides = array<i32>} : memref<256x96xbf16, #tpu.memory_space<vmem>>, vector<256x96xbf16>,
    } else {
    }
    return
  }
  func.func @transform_0(%arg0: i32, %arg1: i32, %arg2: i32) -> (i32, i32) {
    %c0_i32 = arith.constant 0 : i32
    return %arg0, %arg2 : i32, i32
  }
  func.func @transform_1(%arg0: i32, %arg1: i32, %arg2: i32) -> (i32, i32) {
    %c0_i32 = arith.constant 0 : i32
    return %arg2, %arg1 : i32, i32
  }
  func.func @transform_2(%arg0: i32, %arg1: i32, %arg2: i32) -> (i32, i32) {
    %c0_i32 = arith.constant 0 : i32
    return %arg0, %arg1 : i32, i32
  }
}

</mosaic_0001>

<llo_original>
// kernel: tpu_custom_call.1
$region0: #{tpu_custom_call.1}
  #allocation0 [shape = 'u32[]', space=smem, size = 0x4, offset = 0x4, fixed_abs, tag = 'smem constant byte address 0x4 - core index']
  #allocation1 [shape = 'u32[144,128]{1,0:T(1,128)}', space=vmem, size = 0x12000, scoped, tag = 'internal scratch']
  #allocation2 [shape = 'f32[256,96]{1,0:T(8,128)}', space=vmem, size = 0x20000, scoped, tag = 'scratch operand']
  %s0 = inlined_call_operand.vmem [shape: bf16[512,32], index: 0, kind: input, shape index: {}]
  %s1 = inlined_call_operand.vmem [shape: bf16[32,96], index: 1, kind: input, shape index: {}]
  %s2 = inlined_call_operand.vmem [shape: bf16[512,96], index: 2, kind: output, shape index: {}]
  %s3 = sld [smem:[#allocation0]]
  $region49: #{tpu_custom_call.1} parent=0
    _
  %s5 = ssub.s32 1, %s3
  %s6 = scalar_select 0, %s5, %s3
  loop: start=0, step=1, limit=4
  $region2: #{tpu_custom_call.1} parent=0 // loop_pre_header
    _
  $region3: #{tpu_custom_call.1} parent=0 // loop_header
    %s8 = sphi 0, %s12
    %p9 = scmp.ge.s32.totalorder %s8, 4
    %s15 = sphi 0, %s34
    %s16 = sphi 0, %s30
    %s17 = sphi 0, %s26
    %s18 = sphi 0, %s15
    %s19 = sphi 0, %s16
    %s20 = sphi 0, %s17
    %s21 = sphi 0, %s18
    %s22 = sphi 0, %s19
    %s23 = sphi 0, %s20
    %s39 = sphi 0, %s41
    %s42 = sphi 0, %s39
    %s43 = sphi 0, %s42
    %s59 = sphi 0, %s43
    %s67 = sphi 0, %s69
    %s70 = sphi 0, %s67
    %s71 = sphi 0, %s70
    %s87 = sphi 0, %s71
    %s95 = sphi 0, %s97
    %s98 = sphi 0, %s95
    %s99 = sphi 0, %s98
    %s115 = sphi 0, %s99
  $region4: #{tpu_custom_call.1} parent=0 // loop_header_branch
    %11 = sbr.rel (%p9) target = $region8
  $region5: #{tpu_custom_call.1} parent=0 // loop_body
    %s13 = ssub.s32 %s8, 1
    %s14 = ssub.s32 %s8, 2
    %s24 = sadd.s32 1, %s17
    %p25 = scmp.ge.s32.totalorder %s24, 1
    %s26 = scalar_select %p25, 0, %s24
    %s27 = sadd.s32 1, %s16
    %s28 = scalar_select %p25, %s27, %s16
    %p29 = scmp.ge.s32.totalorder %s28, 1
    %s30 = scalar_select %p29, 0, %s28
    %s31 = sadd.s32 1, %s15
    %s32 = scalar_select %p29, %s31, %s15
    %p33 = scmp.ge.s32.totalorder %s32, 2
    %s34 = scalar_select %p33, 0, %s32
    %s35 = ssub.s32 %s15, %s34
    %s36 = ssub.s32 %s17, %s26
    %s37 = sor.u32 %s35, %s36
    %p38 = scmp.eq.s32.totalorder %s37, 0
    %s40 = sadd.s32 %s39, 1
    %s41 = scalar_select %p38, %s39, %s40
    %p44 = pneg %p38
    %p45 = scmp.eq.s32.totalorder %s8, 1
    %p46 = por %p44, %p45
    %p47 = scmp.ne.s32.totalorder %s39, %s42
    %p48 = scmp.eq.s32.totalorder %s8, 0
    %p49 = por %p47, %p48
    %p50 = scmp.ne.s32.totalorder %s39, %s42
    %p51 = scmp.eq.s32.totalorder %s13, 1
    %p52 = por %p50, %p51
    %p53 = scmp.ne.s32.totalorder %s42, %s43
    %p54 = scmp.eq.s32.totalorder %s13, 0
    %p55 = por %p53, %p54
    %p56 = scmp.ne.s32.totalorder %s42, %s43
    %p57 = scmp.eq.s32.totalorder %s14, 1
    %p58 = por %p56, %p57
    %p60 = scmp.ne.s32.totalorder %s43, %s59
    %p61 = scmp.eq.s32.totalorder %s14, 0
    %p62 = por %p60, %p61
    %s63 = ssub.s32 %s17, %s26
    %s64 = ssub.s32 %s16, %s30
    %s65 = sor.u32 %s63, %s64
    %p66 = scmp.eq.s32.totalorder %s65, 0
    %s68 = sadd.s32 %s67, 1
    %s69 = scalar_select %p66, %s67, %s68
    %p72 = pneg %p66
    %p73 = scmp.eq.s32.totalorder %s8, 1
    %p74 = por %p72, %p73
    %p75 = scmp.ne.s32.totalorder %s67, %s70
    %p76 = scmp.eq.s32.totalorder %s8, 0
    %p77 = por %p75, %p76
    %p78 = scmp.ne.s32.totalorder %s67, %s70
    %p79 = scmp.eq.s32.totalorder %s13, 1
    %p80 = por %p78, %p79
    %p81 = scmp.ne.s32.totalorder %s70, %s71
    %p82 = scmp.eq.s32.totalorder %s13, 0
    %p83 = por %p81, %p82
    %p84 = scmp.ne.s32.totalorder %s70, %s71
    %p85 = scmp.eq.s32.totalorder %s14, 1
    %p86 = por %p84, %p85
    %p88 = scmp.ne.s32.totalorder %s71, %s87
    %p89 = scmp.eq.s32.totalorder %s14, 0
    %p90 = por %p88, %p89
    %s91 = ssub.s32 %s15, %s34
    %s92 = ssub.s32 %s16, %s30
    %s93 = sor.u32 %s91, %s92
    %p94 = scmp.eq.s32.totalorder %s93, 0
    %s96 = sadd.s32 %s95, 1
    %s97 = scalar_select %p94, %s95, %s96
    %p100 = pneg %p94
    %p101 = scmp.eq.s32.totalorder %s8, 1
    %p102 = por %p100, %p101
    %p103 = scmp.ne.s32.totalorder %s95, %s98
    %p104 = scmp.eq.s32.totalorder %s8, 0
    %p105 = por %p103, %p104
    %p106 = scmp.ne.s32.totalorder %s95, %s98
    %p107 = scmp.eq.s32.totalorder %s13, 1
    %p108 = por %p106, %p107
    %p109 = scmp.ne.s32.totalorder %s98, %s99
    %p110 = scmp.eq.s32.totalorder %s13, 0
    %p111 = por %p109, %p110
    %p112 = scmp.ne.s32.totalorder %s98, %s99
    %p113 = scmp.eq.s32.totalorder %s14, 1
    %p114 = por %p112, %p113
    %p116 = scmp.ne.s32.totalorder %s99, %s115
    %p117 = scmp.eq.s32.totalorder %s14, 0
    %p118 = por %p116, %p117
    %p119 = scmp.le.s32.totalorder 1, %s8
    %p120 = scmp.lt.s32.totalorder %s8, 3
    %p121 = pnand %p119, %p120
    %p122 = pneg %p121
    // Predicated region
    $region9: #{tpu_custom_call.1} parent=5 // pred_check
      _
    $region10: #{tpu_custom_call.1} parent=5 // pred_check_branch
      %124 = sbr.rel (%p121) target = $region12
    $region11: #{tpu_custom_call.1} parent=5 // pred_region
      %s125 = ssub.s32 %s8, 1
      // Predicated region
      $region13: #{tpu_custom_call.1} parent=11 // pred_check
        %p126 = pneg %p83
      $region14: #{tpu_custom_call.1} parent=11 // pred_check_branch
        %128 = sbr.rel (%p126) target = $region16
      $region15: #{tpu_custom_call.1} parent=11 // pred_region
        %s129 = smul.u32 4, %s20
        %p130 = scmp.lt.s32.totalorder %s129, 3
        %s131 = scalar_select %p130, %s129, 3
        %p132 = scmp.lt.s32.totalorder %s19, 0
        %s133 = scalar_select %p132, %s19, 0
        %s134 = sadd.s32 %s133, %s131
        %s135 = smul.addr %s134, 4
        %s136 = scalar_lea.vmem %s1, %s135
        %s137 = smul.u32 4, %s20
      $region16: #{tpu_custom_call.1} parent=11 // pred_fallthru
        _
    $region12: #{tpu_custom_call.1} parent=5 // pred_fallthru
      _
    %p138 = scmp.lt.s32.totalorder %s8, 2
    // Predicated region
    $region17: #{tpu_custom_call.1} parent=5 // pred_check
      %p139 = pneg %p138
    $region18: #{tpu_custom_call.1} parent=5 // pred_check_branch
      %141 = sbr.rel (%p139) target = $region20
    $region19: #{tpu_custom_call.1} parent=5 // pred_region
      // Predicated region
      $region21: #{tpu_custom_call.1} parent=19 // pred_check
        %p142 = pneg %p49
      $region22: #{tpu_custom_call.1} parent=19 // pred_check_branch
        %144 = sbr.rel (%p142) target = $region24
      $region23: #{tpu_custom_call.1} parent=19 // pred_region
        %s145 = smul.u32 32, %s15
        %p146 = scmp.lt.s32.totalorder %s145, 63
        %s147 = scalar_select %p146, %s145, 63
        %p148 = scmp.lt.s32.totalorder %s17, 0
        %s149 = scalar_select %p148, %s17, 0
        %s150 = sadd.s32 %s149, %s147
        %s151 = smul.addr %s150, 4
        %s152 = scalar_lea.vmem %s0, %s151
        %s153 = smul.u32 32, %s15
      $region24: #{tpu_custom_call.1} parent=19 // pred_fallthru
        _
    $region20: #{tpu_custom_call.1} parent=5 // pred_fallthru
      _
    %p154 = scmp.le.s32.totalorder 1, %s8
    %p155 = scmp.lt.s32.totalorder %s8, 3
    %p156 = pnand %p154, %p155
    %p157 = pneg %p156
    // Predicated region
    $region25: #{tpu_custom_call.1} parent=5 // pred_check
      _
    $region26: #{tpu_custom_call.1} parent=5 // pred_check_branch
      %159 = sbr.rel (%p156) target = $region28
    $region27: #{tpu_custom_call.1} parent=5 // pred_region
      %s160 = ssub.s32 %s8, 1
      %s161 = smul.u32 32, %s18
      %p162 = scmp.lt.s32.totalorder %s161, 63
      %s163 = scalar_select %p162, %s161, 63
      %p164 = scmp.lt.s32.totalorder %s20, 0
      %s165 = scalar_select %p164, %s20, 0
      %s166 = sadd.s32 %s165, %s163
      %s167 = smul.addr %s166, 4
      %s168 = scalar_lea.vmem %s0, %s167
      %p169 = pneg %p55
      %p170 = pneg %p52
      %s171 = smul.u32 4, %s20
      %p172 = scmp.lt.s32.totalorder %s171, 3
      %s173 = scalar_select %p172, %s171, 3
      %p174 = scmp.lt.s32.totalorder %s19, 0
      %s175 = scalar_select %p174, %s19, 0
      %s176 = sadd.s32 %s175, %s173
      %s177 = smul.addr %s176, 4
      %s178 = scalar_lea.vmem %s1, %s177
      %p179 = pneg %p83
      %p180 = pneg %p80
      %p181 = pneg %p111
      %p182 = pneg %p108
      %s183 = smul.u32 32, %s18
      %p184 = scmp.lt.s32.totalorder %s183, 63
      %s185 = scalar_select %p184, %s183, 63
      %p186 = scmp.lt.s32.totalorder %s19, 0
      %s187 = scalar_select %p186, %s19, 0
      %s188 = sadd.s32 %s187, %s185
      %s189 = smul.addr %s188, 4
      %s190 = scalar_lea.vmem %s2, %s189
      %s191 = smul.u32 32, %s18
      %p192 = scmp.lt.s32.totalorder %s191, 63
      %s193 = scalar_select %p192, %s191, 63
      %p194 = scmp.lt.s32.totalorder %s20, 0
      %s195 = scalar_select %p194, %s20, 0
      %s196 = sadd.s32 %s195, %s193
      %s197 = smul.addr %s196, 4
      %s198 = scalar_lea.vmem %s0, %s197
      %s199 = smul.u32 32, %s18
      %s200 = smul.u32 4, %s20
      %p201 = scmp.lt.s32.totalorder %s200, 3
      %s202 = scalar_select %p201, %s200, 3
      %p203 = scmp.lt.s32.totalorder %s19, 0
      %s204 = scalar_select %p203, %s19, 0
      %s205 = sadd.s32 %s204, %s202
      %s206 = smul.addr %s205, 4
      %s207 = scalar_lea.vmem %s1, %s206
      %s208 = smul.u32 4, %s20
      %s209 = smul.u32 32, %s18
      %p210 = scmp.lt.s32.totalorder %s209, 63
      %s211 = scalar_select %p210, %s209, 63
      %p212 = scmp.lt.s32.totalorder %s19, 0
      %s213 = scalar_select %p212, %s19, 0
      %s214 = sadd.s32 %s213, %s211
      %s215 = smul.addr %s214, 4
      %s216 = scalar_lea.vmem %s2, %s215
      %s217 = smul.u32 32, %s18
      %p219 = scmp.eq.s32.totalorder %s20, 0
      // Predicated region
      $region29: #{tpu_custom_call.1} parent=27 // pred_check
        %p220 = pneg %p219
      $region30: #{tpu_custom_call.1} parent=27 // pred_check_branch
        %222 = sbr.rel (%p220) target = $region32
      $region31: #{tpu_custom_call.1} parent=27 // pred_region
        %vm223 = vcmask 785408
        %224 = vst.msk [vmem:[#allocation2] sm:$0xff] %vm223, 0.0
        %225 = vst.msk [vmem:[#allocation2 + $0x8] sm:$0xff] %vm223, 0.0
        %226 = vst.msk [vmem:[#allocation2 + $0x10] sm:$0xff] %vm223, 0.0
        %227 = vst.msk [vmem:[#allocation2 + $0x18] sm:$0xff] %vm223, 0.0
        %228 = vst.msk [vmem:[#allocation2 + $0x20] sm:$0xff] %vm223, 0.0
        %229 = vst.msk [vmem:[#allocation2 + $0x28] sm:$0xff] %vm223, 0.0
        %230 = vst.msk [vmem:[#allocation2 + $0x30] sm:$0xff] %vm223, 0.0
        %231 = vst.msk [vmem:[#allocation2 + $0x38] sm:$0xff] %vm223, 0.0
        %232 = vst.msk [vmem:[#allocation2 + $0x40] sm:$0xff] %vm223, 0.0
        %233 = vst.msk [vmem:[#allocation2 + $0x48] sm:$0xff] %vm223, 0.0
        %234 = vst.msk [vmem:[#allocation2 + $0x50] sm:$0xff] %vm223, 0.0
        %235 = vst.msk [vmem:[#allocation2 + $0x58] sm:$0xff] %vm223, 0.0
        %236 = vst.msk [vmem:[#allocation2 + $0x60] sm:$0xff] %vm223, 0.0
        %237 = vst.msk [vmem:[#allocation2 + $0x68] sm:$0xff] %vm223, 0.0
        %238 = vst.msk [vmem:[#allocation2 + $0x70] sm:$0xff] %vm223, 0.0
        %239 = vst.msk [vmem:[#allocation2 + $0x78] sm:$0xff] %vm223, 0.0
        %240 = vst.msk [vmem:[#allocation2 + $0x80] sm:$0xff] %vm223, 0.0
        %241 = vst.msk [vmem:[#allocation2 + $0x88] sm:$0xff] %vm223, 0.0
        %242 = vst.msk [vmem:[#allocation2 + $0x90] sm:$0xff] %vm223, 0.0
        %243 = vst.msk [vmem:[#allocation2 + $0x98] sm:$0xff] %vm223, 0.0
        %244 = vst.msk [vmem:[#allocation2 + $0xa0] sm:$0xff] %vm223, 0.0
        %245 = vst.msk [vmem:[#allocation2 + $0xa8] sm:$0xff] %vm223, 0.0
        %246 = vst.msk [vmem:[#allocation2 + $0xb0] sm:$0xff] %vm223, 0.0
        %247 = vst.msk [vmem:[#allocation2 + $0xb8] sm:$0xff] %vm223, 0.0
        %248 = vst.msk [vmem:[#allocation2 + $0xc0] sm:$0xff] %vm223, 0.0
        %249 = vst.msk [vmem:[#allocation2 + $0xc8] sm:$0xff] %vm223, 0.0
        %250 = vst.msk [vmem:[#allocation2 + $0xd0] sm:$0xff] %vm223, 0.0
        %251 = vst.msk [vmem:[#allocation2 + $0xd8] sm:$0xff] %vm223, 0.0
        %252 = vst.msk [vmem:[#allocation2 + $0xe0] sm:$0xff] %vm223, 0.0
        %253 = vst.msk [vmem:[#allocation2 + $0xe8] sm:$0xff] %vm223, 0.0
        %254 = vst.msk [vmem:[#allocation2 + $0xf0] sm:$0xff] %vm223, 0.0
        %255 = vst.msk [vmem:[#allocation2 + $0xf8] sm:$0xff] %vm223, 0.0
      $region32: #{tpu_custom_call.1} parent=27 // pred_fallthru
        _
      %v256 = vld [vmem:[#allocation2] sm:$0xff]
      %v257 = vld [vmem:[#allocation2 + $0x8] sm:$0xff]
      %v258 = vld [vmem:[#allocation2 + $0x10] sm:$0xff]
      %v259 = vld [vmem:[#allocation2 + $0x18] sm:$0xff]
      %v260 = vld [vmem:[#allocation2 + $0x20] sm:$0xff]
      %v261 = vld [vmem:[#allocation2 + $0x28] sm:$0xff]
      %v262 = vld [vmem:[#allocation2 + $0x30] sm:$0xff]
      %v263 = vld [vmem:[#allocation2 + $0x38] sm:$0xff]
      %v264 = vld [vmem:[#allocation2 + $0x40] sm:$0xff]
      %v265 = vld [vmem:[#allocation2 + $0x48] sm:$0xff]
      %v266 = vld [vmem:[#allocation2 + $0x50] sm:$0xff]
      %v267 = vld [vmem:[#allocation2 + $0x58] sm:$0xff]
      %v268 = vld [vmem:[#allocation2 + $0x60] sm:$0xff]
      %v269 = vld [vmem:[#allocation2 + $0x68] sm:$0xff]
      %v270 = vld [vmem:[#allocation2 + $0x70] sm:$0xff]
      %v271 = vld [vmem:[#allocation2 + $0x78] sm:$0xff]
      %v272 = vld [vmem:[#allocation2 + $0x80] sm:$0xff]
      %v273 = vld [vmem:[#allocation2 + $0x88] sm:$0xff]
      %v274 = vld [vmem:[#allocation2 + $0x90] sm:$0xff]
      %v275 = vld [vmem:[#allocation2 + $0x98] sm:$0xff]
      %v276 = vld [vmem:[#allocation2 + $0xa0] sm:$0xff]
      %v277 = vld [vmem:[#allocation2 + $0xa8] sm:$0xff]
      %v278 = vld [vmem:[#allocation2 + $0xb0] sm:$0xff]
      %v279 = vld [vmem:[#allocation2 + $0xb8] sm:$0xff]
      %v280 = vld [vmem:[#allocation2 + $0xc0] sm:$0xff]
      %v281 = vld [vmem:[#allocation2 + $0xc8] sm:$0xff]
      %v282 = vld [vmem:[#allocation2 + $0xd0] sm:$0xff]
      %v283 = vld [vmem:[#allocation2 + $0xd8] sm:$0xff]
      %v284 = vld [vmem:[#allocation2 + $0xe0] sm:$0xff]
      %v285 = vld [vmem:[#allocation2 + $0xe8] sm:$0xff]
      %v286 = vld [vmem:[#allocation2 + $0xf0] sm:$0xff]
      %v287 = vld [vmem:[#allocation2 + $0xf8] sm:$0xff]
      %v288 = vld [vmem:[%s198] sm:$0xf]
      %v289 = vld [vmem:[%s198 + $0x4] sm:$0xf]
      %v290 = vld [vmem:[%s198 + $0x8] sm:$0xf]
      %v291 = vld [vmem:[%s198 + $0xc] sm:$0xf]
      %v292 = vld [vmem:[%s198 + $0x10] sm:$0xf]
      %v293 = vld [vmem:[%s198 + $0x14] sm:$0xf]
      %v294 = vld [vmem:[%s198 + $0x18] sm:$0xf]
      %v295 = vld [vmem:[%s198 + $0x1c] sm:$0xf]
      %v296 = vld [vmem:[%s198 + $0x20] sm:$0xf]
      %v297 = vld [vmem:[%s198 + $0x24] sm:$0xf]
      %v298 = vld [vmem:[%s198 + $0x28] sm:$0xf]
      %v299 = vld [vmem:[%s198 + $0x2c] sm:$0xf]
      %v300 = vld [vmem:[%s198 + $0x30] sm:$0xf]
      %v301 = vld [vmem:[%s198 + $0x34] sm:$0xf]
      %v302 = vld [vmem:[%s198 + $0x38] sm:$0xf]
      %v303 = vld [vmem:[%s198 + $0x3c] sm:$0xf]
      %v304 = vld [vmem:[%s198 + $0x40] sm:$0xf]
      %v305 = vld [vmem:[%s198 + $0x44] sm:$0xf]
      %v306 = vld [vmem:[%s198 + $0x48] sm:$0xf]
      %v307 = vld [vmem:[%s198 + $0x4c] sm:$0xf]
      %v308 = vld [vmem:[%s198 + $0x50] sm:$0xf]
      %v309 = vld [vmem:[%s198 + $0x54] sm:$0xf]
      %v310 = vld [vmem:[%s198 + $0x58] sm:$0xf]
      %v311 = vld [vmem:[%s198 + $0x5c] sm:$0xf]
      %v312 = vld [vmem:[%s198 + $0x60] sm:$0xf]
      %v313 = vld [vmem:[%s198 + $0x64] sm:$0xf]
      %v314 = vld [vmem:[%s198 + $0x68] sm:$0xf]
      %v315 = vld [vmem:[%s198 + $0x6c] sm:$0xf]
      %v316 = vld [vmem:[%s198 + $0x70] sm:$0xf]
      %v317 = vld [vmem:[%s198 + $0x74] sm:$0xf]
      %v318 = vld [vmem:[%s198 + $0x78] sm:$0xf]
      %v319 = vld [vmem:[%s198 + $0x7c] sm:$0xf]
      %v320 = vld [vmem:[%s207] sm:$0xf]
      %v321 = vld [vmem:[%s207 + $0x4] sm:$0xf]
      %v322 = vld [vmem:[%s207 + $0x8] sm:$0xf]
      %v323 = vld [vmem:[%s207 + $0xc] sm:$0xf]
      %v356 = vunpack.c.l.b16 %v288
      %v357 = vunpack.c.l.b16 %v289
      %v358 = vunpack.c.l.b16 %v290
      %v359 = vunpack.c.l.b16 %v291
      %v360 = vunpack.c.l.b16 %v292
      %v361 = vunpack.c.l.b16 %v293
      %v362 = vunpack.c.l.b16 %v294
      %v363 = vunpack.c.l.b16 %v295
      %v364 = vunpack.c.l.b16 %v296
      %v365 = vunpack.c.l.b16 %v297
      %v366 = vunpack.c.l.b16 %v298
      %v367 = vunpack.c.l.b16 %v299
      %v368 = vunpack.c.l.b16 %v300
      %v369 = vunpack.c.l.b16 %v301
      %v370 = vunpack.c.l.b16 %v302
      %v371 = vunpack.c.l.b16 %v303
      %v372 = vunpack.c.l.b16 %v304
      %v373 = vunpack.c.l.b16 %v305
      %v374 = vunpack.c.l.b16 %v306
      %v375 = vunpack.c.l.b16 %v307
      %v376 = vunpack.c.l.b16 %v308
      %v377 = vunpack.c.l.b16 %v309
      %v378 = vunpack.c.l.b16 %v310
      %v379 = vunpack.c.l.b16 %v311
      %v380 = vunpack.c.l.b16 %v312
      %v381 = vunpack.c.l.b16 %v313
      %v382 = vunpack.c.l.b16 %v314
      %v383 = vunpack.c.l.b16 %v315
      %v384 = vunpack.c.l.b16 %v316
      %v385 = vunpack.c.l.b16 %v317
      %v386 = vunpack.c.l.b16 %v318
      %v387 = vunpack.c.l.b16 %v319
      %v388 = vpack.c.b16 %v357, %v356
      %v389 = vpack.c.b16 %v359, %v358
      %v390 = vpack.c.b16 %v361, %v360
      %v391 = vpack.c.b16 %v363, %v362
      %v392 = vpack.c.b16 %v365, %v364
      %v393 = vpack.c.b16 %v367, %v366
      %v394 = vpack.c.b16 %v369, %v368
      %v395 = vpack.c.b16 %v371, %v370
      %v396 = vpack.c.b16 %v373, %v372
      %v397 = vpack.c.b16 %v375, %v374
      %v398 = vpack.c.b16 %v377, %v376
      %v399 = vpack.c.b16 %v379, %v378
      %v400 = vpack.c.b16 %v381, %v380
      %v401 = vpack.c.b16 %v383, %v382
      %v402 = vpack.c.b16 %v385, %v384
      %v403 = vpack.c.b16 %v387, %v386
      %v408 = vunpack.c.l.b16 %v320
      %v409 = vunpack.c.l.b16 %v321
      %v410 = vunpack.c.l.b16 %v322
      %v411 = vunpack.c.l.b16 %v323
      %v412 = vpack.c.b16 %v409, %v408
      %v413 = vpack.c.b16 %v411, %v410
      %vm416 = vcmask 261120
      %v418 = vsel %vm416, %v388, 0
      %v421 = vsel %vm416, %v389, 0
      %v424 = vsel %vm416, %v390, 0
      %v427 = vsel %vm416, %v391, 0
      %v430 = vsel %vm416, %v392, 0
      %v433 = vsel %vm416, %v393, 0
      %v436 = vsel %vm416, %v394, 0
      %v439 = vsel %vm416, %v395, 0
      %v442 = vsel %vm416, %v396, 0
      %v445 = vsel %vm416, %v397, 0
      %v448 = vsel %vm416, %v398, 0
      %v451 = vsel %vm416, %v399, 0
      %v454 = vsel %vm416, %v400, 0
      %v457 = vsel %vm416, %v401, 0
      %v460 = vsel %vm416, %v402, 0
      %v463 = vsel %vm416, %v403, 0
      %465 = vmatprep.subr.bf16.mxu0 0
      %466 = vmatpush1.bf16.msra.mxu0 %v412
      %467 = vmatprep.subr.bf16.mxu0 0
      %468 = vmatpush1.bf16.msra.mxu0 %v413
      %469 = vmatprep.subr.bf16.mxu0 0
      %470 = vmatpush1.bf16.msra.mxu0 0
      %471 = vmatprep.subr.bf16.mxu0 0
      %472 = vmatpush1.bf16.msra.mxu0 0
      %473 = vmatprep.subr.bf16.mxu0 0
      %474 = vmatpush1.bf16.msra.mxu0 0
      %475 = vmatprep.subr.bf16.mxu0 0
      %476 = vmatpush1.bf16.msra.mxu0 0
      %477 = vmatprep.subr.bf16.mxu0 0
      %478 = vmatpush1.bf16.msra.mxu0 0
      %479 = vmatprep.subr.bf16.mxu0 0
      %480 = vmatpush1.bf16.msra.mxu0 0
      %481 = vmatprep.subr.bf16.mxu0 0
      %482 = vmatpush1.bf16.msra.mxu0 0
      %483 = vmatprep.subr.bf16.mxu0 0
      %484 = vmatpush1.bf16.msra.mxu0 0
      %485 = vmatprep.subr.bf16.mxu0 0
      %486 = vmatpush1.bf16.msra.mxu0 0
      %487 = vmatprep.subr.bf16.mxu0 0
      %488 = vmatpush1.bf16.msra.mxu0 0
      %489 = vmatprep.subr.bf16.mxu0 0
      %490 = vmatpush1.bf16.msra.mxu0 0
      %491 = vmatprep.subr.bf16.mxu0 0
      %492 = vmatpush1.bf16.msra.mxu0 0
      %493 = vmatprep.subr.bf16.mxu0 0
      %494 = vmatpush1.bf16.msra.mxu0 0
      %495 = vmatprep.subr.bf16.mxu0 0
      %496 = vmatpush1.bf16.msra.mxu0 0
      %497 = vmatprep.mubr.bf16.mxu0 0
      %498 = vmatmul.mubr.bf16.gmra.mrb[0].mxu0 %v418
      %v499 = vpop.f32.mrb[0].mxu0
      %v500 = vadd.f32 0.0, %v499
      %v501 = vpop.f32.mrb[0].mxu0
      %v502 = vpop.f32.mrb[0].mxu0
      %v503 = vadd.f32 0.0, %v502
      %v504 = vpop.f32.mrb[0].mxu0
      %505 = vmatprep.mubr.bf16.mxu0 0
      %506 = vmatmul.mubr.bf16.gmra.mrb[0].mxu0 %v421
      %v507 = vpop.f32.mrb[0].mxu0
      %v508 = vadd.f32 0.0, %v507
      %v509 = vpop.f32.mrb[0].mxu0
      %v510 = vpop.f32.mrb[0].mxu0
      %v511 = vadd.f32 0.0, %v510
      %v512 = vpop.f32.mrb[0].mxu0
      %513 = vmatprep.mubr.bf16.mxu0 0
      %514 = vmatmul.mubr.bf16.gmra.mrb[0].mxu0 %v424
      %v515 = vpop.f32.mrb[0].mxu0
      %v516 = vadd.f32 0.0, %v515
      %v517 = vpop.f32.mrb[0].mxu0
      %v518 = vpop.f32.mrb[0].mxu0
      %v519 = vadd.f32 0.0, %v518
      %v520 = vpop.f32.mrb[0].mxu0
      %521 = vmatprep.mubr.bf16.mxu0 0
      %522 = vmatmul.mubr.bf16.gmra.mrb[0].mxu0 %v427
      %v523 = vpop.f32.mrb[0].mxu0
      %v524 = vadd.f32 0.0, %v523
      %v525 = vpop.f32.mrb[0].mxu0
      %v526 = vpop.f32.mrb[0].mxu0
      %v527 = vadd.f32 0.0, %v526
      %v528 = vpop.f32.mrb[0].mxu0
      %529 = vmatprep.mubr.bf16.mxu0 0
      %530 = vmatmul.mubr.bf16.gmra.mrb[0].mxu0 %v430
      %v531 = vpop.f32.mrb[0].mxu0
      %v532 = vadd.f32 0.0, %v531
      %v533 = vpop.f32.mrb[0].mxu0
      %v534 = vpop.f32.mrb[0].mxu0
      %v535 = vadd.f32 0.0, %v534
      %v536 = vpop.f32.mrb[0].mxu0
      %537 = vmatprep.mubr.bf16.mxu0 0
      %538 = vmatmul.mubr.bf16.gmra.mrb[0].mxu0 %v433
      %v539 = vpop.f32.mrb[0].mxu0
      %v540 = vadd.f32 0.0, %v539
      %v541 = vpop.f32.mrb[0].mxu0
      %v542 = vpop.f32.mrb[0].mxu0
      %v543 = vadd.f32 0.0, %v542
      %v544 = vpop.f32.mrb[0].mxu0
      %545 = vmatprep.mubr.bf16.mxu0 0
      %546 = vmatmul.mubr.bf16.gmra.mrb[0].mxu0 %v436
      %v547 = vpop.f32.mrb[0].mxu0
      %v548 = vadd.f32 0.0, %v547
      %v549 = vpop.f32.mrb[0].mxu0
      %v550 = vpop.f32.mrb[0].mxu0
      %v551 = vadd.f32 0.0, %v550
      %v552 = vpop.f32.mrb[0].mxu0
      %553 = vmatprep.mubr.bf16.mxu0 0
      %554 = vmatmul.mubr.bf16.gmra.mrb[0].mxu0 %v439
      %v555 = vpop.f32.mrb[0].mxu0
      %v556 = vadd.f32 0.0, %v555
      %v557 = vpop.f32.mrb[0].mxu0
      %v558 = vpop.f32.mrb[0].mxu0
      %v559 = vadd.f32 0.0, %v558
      %v560 = vpop.f32.mrb[0].mxu0
      %561 = vmatprep.mubr.bf16.mxu0 0
      %562 = vmatmul.mubr.bf16.gmra.mrb[0].mxu0 %v442
      %v563 = vpop.f32.mrb[0].mxu0
      %v564 = vadd.f32 0.0, %v563
      %v565 = vpop.f32.mrb[0].mxu0
      %v566 = vpop.f32.mrb[0].mxu0
      %v567 = vadd.f32 0.0, %v566
      %v568 = vpop.f32.mrb[0].mxu0
      %569 = vmatprep.mubr.bf16.mxu0 0
      %570 = vmatmul.mubr.bf16.gmra.mrb[0].mxu0 %v445
      %v571 = vpop.f32.mrb[0].mxu0
      %v572 = vadd.f32 0.0, %v571
      %v573 = vpop.f32.mrb[0].mxu0
      %v574 = vpop.f32.mrb[0].mxu0
      %v575 = vadd.f32 0.0, %v574
      %v576 = vpop.f32.mrb[0].mxu0
      %577 = vmatprep.mubr.bf16.mxu0 0
      %578 = vmatmul.mubr.bf16.gmra.mrb[0].mxu0 %v448
      %v579 = vpop.f32.mrb[0].mxu0
      %v580 = vadd.f32 0.0, %v579
      %v581 = vpop.f32.mrb[0].mxu0
      %v582 = vpop.f32.mrb[0].mxu0
      %v583 = vadd.f32 0.0, %v582
      %v584 = vpop.f32.mrb[0].mxu0
      %585 = vmatprep.mubr.bf16.mxu0 0
      %586 = vmatmul.mubr.bf16.gmra.mrb[0].mxu0 %v451
      %v587 = vpop.f32.mrb[0].mxu0
      %v588 = vadd.f32 0.0, %v587
      %v589 = vpop.f32.mrb[0].mxu0
      %v590 = vpop.f32.mrb[0].mxu0
      %v591 = vadd.f32 0.0, %v590
      %v592 = vpop.f32.mrb[0].mxu0
      %593 = vmatprep.mubr.bf16.mxu0 0
      %594 = vmatmul.mubr.bf16.gmra.mrb[0].mxu0 %v454
      %v595 = vpop.f32.mrb[0].mxu0
      %v596 = vadd.f32 0.0, %v595
      %v597 = vpop.f32.mrb[0].mxu0
      %v598 = vpop.f32.mrb[0].mxu0
      %v599 = vadd.f32 0.0, %v598
      %v600 = vpop.f32.mrb[0].mxu0
      %601 = vmatprep.mubr.bf16.mxu0 0
      %602 = vmatmul.mubr.bf16.gmra.mrb[0].mxu0 %v457
      %v603 = vpop.f32.mrb[0].mxu0
      %v604 = vadd.f32 0.0, %v603
      %v605 = vpop.f32.mrb[0].mxu0
      %v606 = vpop.f32.mrb[0].mxu0
      %v607 = vadd.f32 0.0, %v606
      %v608 = vpop.f32.mrb[0].mxu0
      %609 = vmatprep.mubr.bf16.mxu0 0
      %610 = vmatmul.mubr.bf16.gmra.mrb[0].mxu0 %v460
      %v611 = vpop.f32.mrb[0].mxu0
      %v612 = vadd.f32 0.0, %v611
      %v613 = vpop.f32.mrb[0].mxu0
      %v614 = vpop.f32.mrb[0].mxu0
      %v615 = vadd.f32 0.0, %v614
      %v616 = vpop.f32.mrb[0].mxu0
      %617 = vmatprep.mubr.bf16.mxu0 0
      %618 = vmatmul.mubr.bf16.gmra.mrb[0].mxu0 %v463
      %v619 = vpop.f32.mrb[0].mxu0
      %v620 = vadd.f32 0.0, %v619
      %v621 = vpop.f32.mrb[0].mxu0
      %v622 = vpop.f32.mrb[0].mxu0
      %v623 = vadd.f32 0.0, %v622
      %v624 = vpop.f32.mrb[0].mxu0
      %625 = vdwg.mxu0
      %v626 = vadd.f32 %v256, %v500
      %v627 = vadd.f32 %v257, %v503
      %v628 = vadd.f32 %v258, %v508
      %v629 = vadd.f32 %v259, %v511
      %v630 = vadd.f32 %v260, %v516
      %v631 = vadd.f32 %v261, %v519
      %v632 = vadd.f32 %v262, %v524
      %v633 = vadd.f32 %v263, %v527
      %v634 = vadd.f32 %v264, %v532
      %v635 = vadd.f32 %v265, %v535
      %v636 = vadd.f32 %v266, %v540
      %v637 = vadd.f32 %v267, %v543
      %v638 = vadd.f32 %v268, %v548
      %v639 = vadd.f32 %v269, %v551
      %v640 = vadd.f32 %v270, %v556
      %v641 = vadd.f32 %v271, %v559
      %v642 = vadd.f32 %v272, %v564
      %v643 = vadd.f32 %v273, %v567
      %v644 = vadd.f32 %v274, %v572
      %v645 = vadd.f32 %v275, %v575
      %v646 = vadd.f32 %v276, %v580
      %v647 = vadd.f32 %v277, %v583
      %v648 = vadd.f32 %v278, %v588
      %v649 = vadd.f32 %v279, %v591
      %v650 = vadd.f32 %v280, %v596
      %v651 = vadd.f32 %v281, %v599
      %v652 = vadd.f32 %v282, %v604
      %v653 = vadd.f32 %v283, %v607
      %v654 = vadd.f32 %v284, %v612
      %v655 = vadd.f32 %v285, %v615
      %v656 = vadd.f32 %v286, %v620
      %v657 = vadd.f32 %v287, %v623
      %vm658 = vcmask 785408
      %659 = vst.msk [vmem:[#allocation2] sm:$0xff] %vm658, %v626
      %660 = vst.msk [vmem:[#allocation2 + $0x8] sm:$0xff] %vm658, %v627
      %661 = vst.msk [vmem:[#allocation2 + $0x10] sm:$0xff] %vm658, %v628
      %662 = vst.msk [vmem:[#allocation2 + $0x18] sm:$0xff] %vm658, %v629
      %663 = vst.msk [vmem:[#allocation2 + $0x20] sm:$0xff] %vm658, %v630
      %664 = vst.msk [vmem:[#allocation2 + $0x28] sm:$0xff] %vm658, %v631
      %665 = vst.msk [vmem:[#allocation2 + $0x30] sm:$0xff] %vm658, %v632
      %666 = vst.msk [vmem:[#allocation2 + $0x38] sm:$0xff] %vm658, %v633
      %667 = vst.msk [vmem:[#allocation2 + $0x40] sm:$0xff] %vm658, %v634
      %668 = vst.msk [vmem:[#allocation2 + $0x48] sm:$0xff] %vm658, %v635
      %669 = vst.msk [vmem:[#allocation2 + $0x50] sm:$0xff] %vm658, %v636
      %670 = vst.msk [vmem:[#allocation2 + $0x58] sm:$0xff] %vm658, %v637
      %671 = vst.msk [vmem:[#allocation2 + $0x60] sm:$0xff] %vm658, %v638
      %672 = vst.msk [vmem:[#allocation2 + $0x68] sm:$0xff] %vm658, %v639
      %673 = vst.msk [vmem:[#allocation2 + $0x70] sm:$0xff] %vm658, %v640
      %674 = vst.msk [vmem:[#allocation2 + $0x78] sm:$0xff] %vm658, %v641
      %675 = vst.msk [vmem:[#allocation2 + $0x80] sm:$0xff] %vm658, %v642
      %676 = vst.msk [vmem:[#allocation2 + $0x88] sm:$0xff] %vm658, %v643
      %677 = vst.msk [vmem:[#allocation2 + $0x90] sm:$0xff] %vm658, %v644
      %678 = vst.msk [vmem:[#allocation2 + $0x98] sm:$0xff] %vm658, %v645
      %679 = vst.msk [vmem:[#allocation2 + $0xa0] sm:$0xff] %vm658, %v646
      %680 = vst.msk [vmem:[#allocation2 + $0xa8] sm:$0xff] %vm658, %v647
      %681 = vst.msk [vmem:[#allocation2 + $0xb0] sm:$0xff] %vm658, %v648
      %682 = vst.msk [vmem:[#allocation2 + $0xb8] sm:$0xff] %vm658, %v649
      %683 = vst.msk [vmem:[#allocation2 + $0xc0] sm:$0xff] %vm658, %v650
      %684 = vst.msk [vmem:[#allocation2 + $0xc8] sm:$0xff] %vm658, %v651
      %685 = vst.msk [vmem:[#allocation2 + $0xd0] sm:$0xff] %vm658, %v652
      %686 = vst.msk [vmem:[#allocation2 + $0xd8] sm:$0xff] %vm658, %v653
      %687 = vst.msk [vmem:[#allocation2 + $0xe0] sm:$0xff] %vm658, %v654
      %688 = vst.msk [vmem:[#allocation2 + $0xe8] sm:$0xff] %vm658, %v655
      %689 = vst.msk [vmem:[#allocation2 + $0xf0] sm:$0xff] %vm658, %v656
      %690 = vst.msk [vmem:[#allocation2 + $0xf8] sm:$0xff] %vm658, %v657
      // Predicated region
      $region33: #{tpu_custom_call.1} parent=27 // pred_check
        %p691 = pneg %p219
      $region34: #{tpu_custom_call.1} parent=27 // pred_check_branch
        %693 = sbr.rel (%p691) target = $region36
      $region35: #{tpu_custom_call.1} parent=27 // pred_region
        %v694 = vld [vmem:[#allocation2] sm:$0xff]
        %v695 = vld [vmem:[#allocation2 + $0x8] sm:$0xff]
        %v696 = vld [vmem:[#allocation2 + $0x10] sm:$0xff]
        %v697 = vld [vmem:[#allocation2 + $0x18] sm:$0xff]
        %v698 = vld [vmem:[#allocation2 + $0x20] sm:$0xff]
        %v699 = vld [vmem:[#allocation2 + $0x28] sm:$0xff]
        %v700 = vld [vmem:[#allocation2 + $0x30] sm:$0xff]
        %v701 = vld [vmem:[#allocation2 + $0x38] sm:$0xff]
        %v702 = vld [vmem:[#allocation2 + $0x40] sm:$0xff]
        %v703 = vld [vmem:[#allocation2 + $0x48] sm:$0xff]
        %v704 = vld [vmem:[#allocation2 + $0x50] sm:$0xff]
        %v705 = vld [vmem:[#allocation2 + $0x58] sm:$0xff]
        %v706 = vld [vmem:[#allocation2 + $0x60] sm:$0xff]
        %v707 = vld [vmem:[#allocation2 + $0x68] sm:$0xff]
        %v708 = vld [vmem:[#allocation2 + $0x70] sm:$0xff]
        %v709 = vld [vmem:[#allocation2 + $0x78] sm:$0xff]
        %v710 = vld [vmem:[#allocation2 + $0x80] sm:$0xff]
        %v711 = vld [vmem:[#allocation2 + $0x88] sm:$0xff]
        %v712 = vld [vmem:[#allocation2 + $0x90] sm:$0xff]
        %v713 = vld [vmem:[#allocation2 + $0x98] sm:$0xff]
        %v714 = vld [vmem:[#allocation2 + $0xa0] sm:$0xff]
        %v715 = vld [vmem:[#allocation2 + $0xa8] sm:$0xff]
        %v716 = vld [vmem:[#allocation2 + $0xb0] sm:$0xff]
        %v717 = vld [vmem:[#allocation2 + $0xb8] sm:$0xff]
        %v718 = vld [vmem:[#allocation2 + $0xc0] sm:$0xff]
        %v719 = vld [vmem:[#allocation2 + $0xc8] sm:$0xff]
        %v720 = vld [vmem:[#allocation2 + $0xd0] sm:$0xff]
        %v721 = vld [vmem:[#allocation2 + $0xd8] sm:$0xff]
        %v722 = vld [vmem:[#allocation2 + $0xe0] sm:$0xff]
        %v723 = vld [vmem:[#allocation2 + $0xe8] sm:$0xff]
        %v724 = vld [vmem:[#allocation2 + $0xf0] sm:$0xff]
        %v725 = vld [vmem:[#allocation2 + $0xf8] sm:$0xff]
        %v726 = vpack.c.bf16 %v695, %v694
        %v727 = vpack.c.bf16 %v697, %v696
        %v728 = vpack.c.bf16 %v699, %v698
        %v729 = vpack.c.bf16 %v701, %v700
        %v730 = vpack.c.bf16 %v703, %v702
        %v731 = vpack.c.bf16 %v705, %v704
        %v732 = vpack.c.bf16 %v707, %v706
        %v733 = vpack.c.bf16 %v709, %v708
        %v734 = vpack.c.bf16 %v711, %v710
        %v735 = vpack.c.bf16 %v713, %v712
        %v736 = vpack.c.bf16 %v715, %v714
        %v737 = vpack.c.bf16 %v717, %v716
        %v738 = vpack.c.bf16 %v719, %v718
        %v739 = vpack.c.bf16 %v721, %v720
        %v740 = vpack.c.bf16 %v723, %v722
        %v741 = vpack.c.bf16 %v725, %v724
        %v758 = vunpack.c.l.b16 %v726
        %v759 = vunpack.c.h.b16 %v726
        %v760 = vunpack.c.l.b16 %v727
        %v761 = vunpack.c.h.b16 %v727
        %v762 = vunpack.c.l.b16 %v728
        %v763 = vunpack.c.h.b16 %v728
        %v764 = vunpack.c.l.b16 %v729
        %v765 = vunpack.c.h.b16 %v729
        %v766 = vunpack.c.l.b16 %v730
        %v767 = vunpack.c.h.b16 %v730
        %v768 = vunpack.c.l.b16 %v731
        %v769 = vunpack.c.h.b16 %v731
        %v770 = vunpack.c.l.b16 %v732
        %v771 = vunpack.c.h.b16 %v732
        %v772 = vunpack.c.l.b16 %v733
        %v773 = vunpack.c.h.b16 %v733
        %v774 = vunpack.c.l.b16 %v734
        %v775 = vunpack.c.h.b16 %v734
        %v776 = vunpack.c.l.b16 %v735
        %v777 = vunpack.c.h.b16 %v735
        %v778 = vunpack.c.l.b16 %v736
        %v779 = vunpack.c.h.b16 %v736
        %v780 = vunpack.c.l.b16 %v737
        %v781 = vunpack.c.h.b16 %v737
        %v782 = vunpack.c.l.b16 %v738
        %v783 = vunpack.c.h.b16 %v738
        %v784 = vunpack.c.l.b16 %v739
        %v785 = vunpack.c.h.b16 %v739
        %v786 = vunpack.c.l.b16 %v740
        %v787 = vunpack.c.h.b16 %v740
        %v788 = vunpack.c.l.b16 %v741
        %v789 = vunpack.c.h.b16 %v741
        %v790 = vpack.c.b16 %v758, %v758
        %v791 = vpack.c.b16 %v759, %v759
        %v792 = vpack.c.b16 %v760, %v760
        %v793 = vpack.c.b16 %v761, %v761
        %v794 = vpack.c.b16 %v762, %v762
        %v795 = vpack.c.b16 %v763, %v763
        %v796 = vpack.c.b16 %v764, %v764
        %v797 = vpack.c.b16 %v765, %v765
        %v798 = vpack.c.b16 %v766, %v766
        %v799 = vpack.c.b16 %v767, %v767
        %v800 = vpack.c.b16 %v768, %v768
        %v801 = vpack.c.b16 %v769, %v769
        %v802 = vpack.c.b16 %v770, %v770
        %v803 = vpack.c.b16 %v771, %v771
        %v804 = vpack.c.b16 %v772, %v772
        %v805 = vpack.c.b16 %v773, %v773
        %v806 = vpack.c.b16 %v774, %v774
        %v807 = vpack.c.b16 %v775, %v775
        %v808 = vpack.c.b16 %v776, %v776
        %v809 = vpack.c.b16 %v777, %v777
        %v810 = vpack.c.b16 %v778, %v778
        %v811 = vpack.c.b16 %v779, %v779
        %v812 = vpack.c.b16 %v780, %v780
        %v813 = vpack.c.b16 %v781, %v781
        %v814 = vpack.c.b16 %v782, %v782
        %v815 = vpack.c.b16 %v783, %v783
        %v816 = vpack.c.b16 %v784, %v784
        %v817 = vpack.c.b16 %v785, %v785
        %v818 = vpack.c.b16 %v786, %v786
        %v819 = vpack.c.b16 %v787, %v787
        %v820 = vpack.c.b16 %v788, %v788
        %v821 = vpack.c.b16 %v789, %v789
        %vm854 = vcmask 781312
        %855 = vst.msk [vmem:[%s216] sm:$0xf] %vm854, %v790
        %856 = vst.msk [vmem:[%s216 + $0x4] sm:$0xf] %vm854, %v791
        %857 = vst.msk [vmem:[%s216 + $0x8] sm:$0xf] %vm854, %v792
        %858 = vst.msk [vmem:[%s216 + $0xc] sm:$0xf] %vm854, %v793
        %859 = vst.msk [vmem:[%s216 + $0x10] sm:$0xf] %vm854, %v794
        %860 = vst.msk [vmem:[%s216 + $0x14] sm:$0xf] %vm854, %v795
        %861 = vst.msk [vmem:[%s216 + $0x18] sm:$0xf] %vm854, %v796
        %862 = vst.msk [vmem:[%s216 + $0x1c] sm:$0xf] %vm854, %v797
        %863 = vst.msk [vmem:[%s216 + $0x20] sm:$0xf] %vm854, %v798
        %864 = vst.msk [vmem:[%s216 + $0x24] sm:$0xf] %vm854, %v799
        %865 = vst.msk [vmem:[%s216 + $0x28] sm:$0xf] %vm854, %v800
        %866 = vst.msk [vmem:[%s216 + $0x2c] sm:$0xf] %vm854, %v801
        %867 = vst.msk [vmem:[%s216 + $0x30] sm:$0xf] %vm854, %v802
        %868 = vst.msk [vmem:[%s216 + $0x34] sm:$0xf] %vm854, %v803
        %869 = vst.msk [vmem:[%s216 + $0x38] sm:$0xf] %vm854, %v804
        %870 = vst.msk [vmem:[%s216 + $0x3c] sm:$0xf] %vm854, %v805
        %871 = vst.msk [vmem:[%s216 + $0x40] sm:$0xf] %vm854, %v806
        %872 = vst.msk [vmem:[%s216 + $0x44] sm:$0xf] %vm854, %v807
        %873 = vst.msk [vmem:[%s216 + $0x48] sm:$0xf] %vm854, %v808
        %874 = vst.msk [vmem:[%s216 + $0x4c] sm:$0xf] %vm854, %v809
        %875 = vst.msk [vmem:[%s216 + $0x50] sm:$0xf] %vm854, %v810
        %876 = vst.msk [vmem:[%s216 + $0x54] sm:$0xf] %vm854, %v811
        %877 = vst.msk [vmem:[%s216 + $0x58] sm:$0xf] %vm854, %v812
        %878 = vst.msk [vmem:[%s216 + $0x5c] sm:$0xf] %vm854, %v813
        %879 = vst.msk [vmem:[%s216 + $0x60] sm:$0xf] %vm854, %v814
        %880 = vst.msk [vmem:[%s216 + $0x64] sm:$0xf] %vm854, %v815
        %881 = vst.msk [vmem:[%s216 + $0x68] sm:$0xf] %vm854, %v816
        %882 = vst.msk [vmem:[%s216 + $0x6c] sm:$0xf] %vm854, %v817
        %883 = vst.msk [vmem:[%s216 + $0x70] sm:$0xf] %vm854, %v818
        %884 = vst.msk [vmem:[%s216 + $0x74] sm:$0xf] %vm854, %v819
        %885 = vst.msk [vmem:[%s216 + $0x78] sm:$0xf] %vm854, %v820
        %886 = vst.msk [vmem:[%s216 + $0x7c] sm:$0xf] %vm854, %v821
      $region36: #{tpu_custom_call.1} parent=27 // pred_fallthru
        _
      %s887 = smul.u32 32, %s18
      %p888 = scmp.lt.s32.totalorder %s887, 63
      %s889 = scalar_select %p888, %s887, 63
      %p890 = scmp.lt.s32.totalorder %s19, 0
      %s891 = scalar_select %p890, %s19, 0
      %s892 = sadd.s32 %s891, %s889
      %s893 = smul.addr %s892, 4
      %s894 = scalar_lea.vmem %s2, %s893
      // Predicated region
      $region37: #{tpu_custom_call.1} parent=27 // pred_check
        %p895 = pneg %p108
      $region38: #{tpu_custom_call.1} parent=27 // pred_check_branch
        %897 = sbr.rel (%p895) target = $region40
      $region39: #{tpu_custom_call.1} parent=27 // pred_region
        %s898 = smul.u32 32, %s18
      $region40: #{tpu_custom_call.1} parent=27 // pred_fallthru
        _
    $region28: #{tpu_custom_call.1} parent=5 // pred_fallthru
      _
    %p899 = scmp.le.s32.totalorder 2, %s8
    // Predicated region
    $region41: #{tpu_custom_call.1} parent=5 // pred_check
      %p900 = pneg %p899
    $region42: #{tpu_custom_call.1} parent=5 // pred_check_branch
      %902 = sbr.rel (%p900) target = $region44
    $region43: #{tpu_custom_call.1} parent=5 // pred_region
      %s903 = ssub.s32 %s8, 2
      // Predicated region
      $region45: #{tpu_custom_call.1} parent=43 // pred_check
        %p904 = pneg %p114
      $region46: #{tpu_custom_call.1} parent=43 // pred_check_branch
        %906 = sbr.rel (%p904) target = $region48
      $region47: #{tpu_custom_call.1} parent=43 // pred_region
        %s907 = smul.u32 32, %s21
        %p908 = scmp.lt.s32.totalorder %s907, 63
        %s909 = scalar_select %p908, %s907, 63
        %p910 = scmp.lt.s32.totalorder %s22, 0
        %s911 = scalar_select %p910, %s22, 0
        %s912 = sadd.s32 %s911, %s909
        %s913 = smul.addr %s912, 4
        %s914 = scalar_lea.vmem %s2, %s913
      $region48: #{tpu_custom_call.1} parent=43 // pred_fallthru
        _
    $region44: #{tpu_custom_call.1} parent=5 // pred_fallthru
      _
  $region6: #{tpu_custom_call.1} parent=0 // loop_footer
    %s12 = sadd.s32 1, %s8
  $region7: #{tpu_custom_call.1} parent=0 // loop_footer_branch
    %7 = sbr.rel target = $region3
  $region8: #{tpu_custom_call.1} parent=0 // loop_exit
    _

</llo_original>
